<compile_context>
chip_gen: v5e
topology: v5e:2x2
jax: 0.10.0
libtpu: 0.0.40
codegen_flags: <defaults>
</compile_context>

<pallas_src>
import math
import jax
import jax.numpy as jnp
from jax.experimental import pallas as pl
from jax.experimental.pallas import tpu as pltpu

# Small, module-consistent shapes
B, S, D, H, DFF = 2, 8, 32, 4, 64
DH = D // H
EPS = 1e-5          # nn.LayerNorm default
NEG_INF = -1e9
LANES = 128

# Row offsets inside the packed parameter slab (width = LANES, f32)
R_WQKV = 0                  # (D,   3D)  = (32, 96)   [wq*scale | wk | wv]
R_WO   = R_WQKV + D         # (D,   D)   = (32, 32)
R_W1   = R_WO + D           # (D,   DFF) = (32, 64)
R_W2   = R_W1 + D           # (DFF, D)   = (64, 32)
R_BQKV = R_W2 + DFF         # (1, 3D)
R_BO   = R_BQKV + 1         # (1, D)
R_C1   = R_BQKV + 2         # (1, DFF)
R_C2   = R_BQKV + 3         # (1, D)
R_G1   = R_BQKV + 4         # (1, D)
R_BE1  = R_BQKV + 5         # (1, D)
R_G2   = R_BQKV + 6         # (1, D)
R_BE2  = R_BQKV + 7         # (1, D)
N_ROWS = R_BQKV + 8         # 168 rows (multiple of 8)


def _layernorm(x, gamma, beta):
    mu = jnp.mean(x, axis=-1, keepdims=True)
    var = jnp.mean((x - mu) ** 2, axis=-1, keepdims=True)
    return (x - mu) * jax.lax.rsqrt(var + EPS) * gamma + beta


def encoder_block_kernel(x_ref, mask_ref, p_ref, out_ref):
    x = x_ref[...].reshape(B * S, D)                       # free major-dim reshape

    # ---- static views into the packed parameter slab (single DMA for all params) ----
    wqkv = p_ref[R_WQKV:R_WQKV + D, 0:3 * D]               # (32, 96)
    wo   = p_ref[R_WO:R_WO + D, 0:D]                       # (32, 32)
    w1   = p_ref[R_W1:R_W1 + D, 0:DFF]                     # (32, 64)
    w2   = p_ref[R_W2:R_W2 + DFF, 0:D]                     # (64, 32)
    bqkv = p_ref[R_BQKV:R_BQKV + 1, 0:3 * D]               # (1, 96)
    bo   = p_ref[R_BO:R_BO + 1, 0:D]
    c1   = p_ref[R_C1:R_C1 + 1, 0:DFF]
    c2   = p_ref[R_C2:R_C2 + 1, 0:D]
    g1   = p_ref[R_G1:R_G1 + 1, 0:D]
    be1  = p_ref[R_BE1:R_BE1 + 1, 0:D]
    g2   = p_ref[R_G2:R_G2 + 1, 0:D]
    be2  = p_ref[R_BE2:R_BE2 + 1, 0:D]

    # ---- residual block 1: pre-LN multi-head self-attention ----
    xn = _layernorm(x, g1, be1)
    # fused Q|K|V projection (1/sqrt(DH) already folded into the Q columns/bias)
    qkv = jnp.dot(xn, wqkv, preferred_element_type=jnp.float32) + bqkv   # (16, 96)
    qkv = qkv.reshape(B, S, 3 * D)

    # stack heads along the batch axis -> (H*B, S, DH); flat batch index = h*B + b
    qh = jnp.concatenate(
        [qkv[:, :, 0 * D + h * DH: 0 * D + (h + 1) * DH] for h in range(H)], axis=0)
    kh = jnp.concatenate(
        [qkv[:, :, 1 * D + h * DH: 1 * D + (h + 1) * DH] for h in range(H)], axis=0)
    vh = jnp.concatenate(
        [qkv[:, :, 2 * D + h * DH: 2 * D + (h + 1) * DH] for h in range(H)], axis=0)

    # additive mask bias computed in-kernel (a handful of VPU ops), tiled over heads
    mb = jnp.where(mask_ref[...] == 0.0, NEG_INF, 0.0)     # (B, 1, S)
    mb = jnp.tile(mb, (H, 1, 1))                           # (H*B, 1, S)

    # one batched score matmul, ONE softmax over all heads, one batched p@v matmul
    s = jnp.einsum('bqd,bkd->bqk', qh, kh,
                   preferred_element_type=jnp.float32) + mb        # implicit broadcast
    s = s - jnp.max(s, axis=-1, keepdims=True)                     # single max reduce
    p = jnp.exp(s)
    p = p / jnp.sum(p, axis=-1, keepdims=True)                     # exact normalization
    oh = jnp.einsum('bqk,bkd->bqd', p, vh,
                    preferred_element_type=jnp.float32)            # (H*B, S, DH)

    # reassemble heads along lanes, single output-projection matmul
    o = jnp.concatenate([oh[h * B:(h + 1) * B] for h in range(H)], axis=-1)  # (B,S,D)
    attn = jnp.dot(o.reshape(B * S, D), wo, preferred_element_type=jnp.float32) + bo
    y1 = x + attn

    # ---- residual block 2: pre-LN position-wise feed-forward ----
    y1n = _layernorm(y1, g2, be2)
    hdn = jnp.maximum(jnp.dot(y1n, w1, preferred_element_type=jnp.float32) + c1, 0.0)
    ff = jnp.dot(hdn, w2, preferred_element_type=jnp.float32) + c2

    out_ref[...] = (y1 + ff).reshape(B, S, D)


def pack_params(params):
    """One-time packing of all weights/biases/LN params into a (168, 128) f32 slab."""
    (wq, bq, wk, bk, wv, bv, wo, bo,
     g1, be1, g2, be2, w1, c1, w2, c2) = params
    scale = 1.0 / math.sqrt(DH)
    wqkv = jnp.concatenate([wq * scale, wk, wv], axis=1)   # (D, 3D)
    bqkv = jnp.concatenate([bq * scale, bk, bv], axis=1)   # (1, 3D)

    def pad(a):
        return jnp.pad(a, ((0, 0), (0, LANES - a.shape[1])))

    slab = jnp.concatenate(
        [pad(wqkv), pad(wo), pad(w1), pad(w2),
         pad(bqkv), pad(bo), pad(c1), pad(c2),
         pad(g1), pad(be1), pad(g2), pad(be2)], axis=0).astype(jnp.float32)
    assert slab.shape == (N_ROWS, LANES)
    return slab


@jax.jit
def encoder_block(x, mask, packed_params):
    """x: (B,S,D) f32; mask: (B,1,S) {0,1} f32; packed_params: (168,128) f32 slab."""
    vmem = pltpu.MemorySpace.VMEM
    return pl.pallas_call(
        encoder_block_kernel,
        out_shape=jax.ShapeDtypeStruct((B, S, D), jnp.float32),
        # single grid step: the whole problem (<0.2 MiB) lives in VMEM for one invocation
        in_specs=[pl.BlockSpec(memory_space=vmem)] * 3,
        out_specs=pl.BlockSpec(memory_space=vmem),
    )(x, mask, packed_params)


def encoder_block_ref(x, mask, params):
    """Pure-JAX reference with the original (unfused, masked_fill) formulation."""
    (wq, bq, wk, bk, wv, bv, wo, bo,
     g1, be1, g2, be2, w1, c1, w2, c2) = params
    mask_full = jnp.broadcast_to(mask, (B, S, S))

    def one(xb, mb):
        xn = _layernorm(xb, g1[0], be1[0])
        q = xn @ wq + bq[0]
        k = xn @ wk + bk[0]
        v = xn @ wv + bv[0]
        scale = 1.0 / math.sqrt(DH)
        outs = []
        for h in range(H):
            qh, kh, vh = (t[:, h * DH:(h + 1) * DH] for t in (q, k, v))
            s = (qh @ kh.T) * scale
            s = jnp.where(mb == 0.0, NEG_INF, s)            # torch masked_fill semantics
            p = jax.nn.softmax(s, axis=-1)
            outs.append(p @ vh)
        attn = jnp.concatenate(outs, axis=-1) @ wo + bo[0]
        y1 = xb + attn
        y1n = _layernorm(y1, g2[0], be2[0])
        ff = jnp.maximum(y1n @ w1 + c1[0], 0.0) @ w2 + c2[0]
        return y1 + ff

    return jax.vmap(one)(x, mask_full)


def make_params(key):
    def lin(k, fan_in, fan_out):
        bound = 1.0 / math.sqrt(fan_in)
        kw, kb = jax.random.split(k)
        w = jax.random.uniform(kw, (fan_in, fan_out), jnp.float32, -bound, bound)
        b = jax.random.uniform(kb, (1, fan_out), jnp.float32, -bound, bound)
        return w, b

    ks = jax.random.split(key, 6)
    wq, bq = lin(ks[0], D, D)
    wk, bk = lin(ks[1], D, D)
    wv, bv = lin(ks[2], D, D)
    wo, bo = lin(ks[3], D, D)
    w1, c1 = lin(ks[4], D, DFF)
    w2, c2 = lin(ks[5], DFF, D)
    g1 = jnp.ones((1, D), jnp.float32)
    be1 = jnp.zeros((1, D), jnp.float32)
    g2 = jnp.ones((1, D), jnp.float32)
    be2 = jnp.zeros((1, D), jnp.float32)
    return [wq, bq, wk, bk, wv, bv, wo, bo, g1, be1, g2, be2, w1, c1, w2, c2]


if __name__ == "__main__":
    key = jax.random.PRNGKey(0)
    k_x, k_p = jax.random.split(key)

    x = jax.random.normal(k_x, (B, S, D), jnp.float32)

    # Padding-style source mask: batch 0 sees all 8 tokens, batch 1 sees first 5.
    lengths = jnp.array([S, 5])
    col = jnp.arange(S)[None, None, :]                          # (1,1,S)
    mask = (col < lengths[:, None, None]).astype(jnp.float32)   # (B,1,S)

    params = make_params(k_p)
    packed = jax.block_until_ready(pack_params(params))         # one-time, outside per-call path

    out = jax.block_until_ready(encoder_block(x, mask, packed))
    ref = encoder_block_ref(x, mask, params)

    assert out.shape == (B, S, D)
    # exact softmax normalization now; tolerance only covers f32 matmul accumulation order
    assert jnp.allclose(out, ref, atol=1e-3, rtol=1e-3), "mismatch vs JAX reference"

    print("KERNEL_OK")
</pallas_src>

<mosaic_0001>
module attributes {stable_mosaic.version = 11 : i64} {
  func.func @encoder_block_kernel(%arg0: memref<2x8x32xf32, #tpu.memory_space<vmem>>, %arg1: memref<2x1x8xf32, #tpu.memory_space<vmem>>, %arg2: memref<168x128xf32, #tpu.memory_space<vmem>>, %arg3: memref<2x8x32xf32, #tpu.memory_space<vmem>>) attributes {dimension_semantics = [], scalar_prefetch = 0 : i64, scratch_operands = 0 : i64, tpu.core_type = #tpu.core_type<tc>} {
    %c0 = arith.constant 0 : index
    %c0_0 = arith.constant 0 : index
    %c0_1 = arith.constant 0 : index
    %0 = vector.load %arg0[%c0, %c0_0, %c0_1] : memref<2x8x32xf32, #tpu.memory_space<vmem>>, vector<2x8x32xf32>
    %1 = vector.shape_cast %0 : vector<2x8x32xf32> to vector<16x32xf32>
    %c0_2 = arith.constant 0 : index
    %c0_3 = arith.constant 0 : index
    %2 = vector.load %arg2[%c0_2, %c0_3] : memref<168x128xf32, #tpu.memory_space<vmem>>, vector<32x96xf32>
    %c32 = arith.constant 32 : index
    %c0_4 = arith.constant 0 : index
    %3 = vector.load %arg2[%c32, %c0_4] : memref<168x128xf32, #tpu.memory_space<vmem>>, vector<32x32xf32>
    %c64 = arith.constant 64 : index
    %c0_5 = arith.constant 0 : index
    %4 = vector.load %arg2[%c64, %c0_5] : memref<168x128xf32, #tpu.memory_space<vmem>>, vector<32x64xf32>
    %c96 = arith.constant 96 : index
    %c0_6 = arith.constant 0 : index
    %5 = vector.load %arg2[%c96, %c0_6] : memref<168x128xf32, #tpu.memory_space<vmem>>, vector<64x32xf32>
    %c160 = arith.constant 160 : index
    %c0_7 = arith.constant 0 : index
    %6 = vector.load %arg2[%c160, %c0_7] : memref<168x128xf32, #tpu.memory_space<vmem>>, vector<1x96xf32>
    %c161 = arith.constant 161 : index
    %c0_8 = arith.constant 0 : index
    %7 = vector.load %arg2[%c161, %c0_8] : memref<168x128xf32, #tpu.memory_space<vmem>>, vector<1x32xf32>
    %c162 = arith.constant 162 : index
    %c0_9 = arith.constant 0 : index
    %8 = vector.load %arg2[%c162, %c0_9] : memref<168x128xf32, #tpu.memory_space<vmem>>, vector<1x64xf32>
    %c163 = arith.constant 163 : index
    %c0_10 = arith.constant 0 : index
    %9 = vector.load %arg2[%c163, %c0_10] : memref<168x128xf32, #tpu.memory_space<vmem>>, vector<1x32xf32>
    %c164 = arith.constant 164 : index
    %c0_11 = arith.constant 0 : index
    %10 = vector.load %arg2[%c164, %c0_11] : memref<168x128xf32, #tpu.memory_space<vmem>>, vector<1x32xf32>
    %c165 = arith.constant 165 : index
    %c0_12 = arith.constant 0 : index
    %11 = vector.load %arg2[%c165, %c0_12] : memref<168x128xf32, #tpu.memory_space<vmem>>, vector<1x32xf32>
    %c166 = arith.constant 166 : index
    %c0_13 = arith.constant 0 : index
    %12 = vector.load %arg2[%c166, %c0_13] : memref<168x128xf32, #tpu.memory_space<vmem>>, vector<1x32xf32>
    %c167 = arith.constant 167 : index
    %c0_14 = arith.constant 0 : index
    %13 = vector.load %arg2[%c167, %c0_14] : memref<168x128xf32, #tpu.memory_space<vmem>>, vector<1x32xf32>
    %cst = arith.constant dense<0.000000e+00> : vector<16xf32>
    %14 = vector.multi_reduction <add>, %1, %cst [1] : vector<16x32xf32> to vector<16xf32>
    %15 = vector.shape_cast %14 : vector<16xf32> to vector<16x1xf32>
    %cst_15 = arith.constant 3.200000e+01 : f32
    %16 = vector.broadcast %cst_15 : f32 to vector<16x1xf32>
    %17 = arith.divf %15, %16 : vector<16x1xf32>
    %18 = vector.broadcast %17 : vector<16x1xf32> to vector<16x32xf32>
    %19 = arith.subf %1, %18 : vector<16x32xf32>
    %20 = arith.mulf %19, %19 : vector<16x32xf32>
    %cst_16 = arith.constant dense<0.000000e+00> : vector<16xf32>
    %21 = vector.multi_reduction <add>, %20, %cst_16 [1] : vector<16x32xf32> to vector<16xf32>
    %22 = vector.shape_cast %21 : vector<16xf32> to vector<16x1xf32>
    %cst_17 = arith.constant 3.200000e+01 : f32
    %23 = vector.broadcast %cst_17 : f32 to vector<16x1xf32>
    %24 = arith.divf %22, %23 : vector<16x1xf32>
    %25 = vector.broadcast %17 : vector<16x1xf32> to vector<16x32xf32>
    %26 = arith.subf %1, %25 : vector<16x32xf32>
    %cst_18 = arith.constant 9.99999974E-6 : f32
    %27 = vector.broadcast %cst_18 : f32 to vector<16x1xf32>
    %28 = arith.addf %24, %27 : vector<16x1xf32>
    %29 = math.rsqrt %28 : vector<16x1xf32>
    %30 = vector.broadcast %29 : vector<16x1xf32> to vector<16x32xf32>
    %31 = arith.mulf %26, %30 : vector<16x32xf32>
    %32 = vector.broadcast %10 : vector<1x32xf32> to vector<16x32xf32>
    %33 = arith.mulf %31, %32 : vector<16x32xf32>
    %34 = vector.broadcast %11 : vector<1x32xf32> to vector<16x32xf32>
    %35 = arith.addf %33, %34 : vector<16x32xf32>
    %cst_19 = arith.constant dense<0.000000e+00> : vector<16x96xf32>
    %36 = tpu.matmul %35, %2, %cst_19 {dimension_numbers = #tpu.dot_dimension_numbers<[1], [0], [0], [1], [0, 0, 1, 1], [], []>} : vector<16x32xf32>, vector<32x96xf32>, vector<16x96xf32> -> vector<16x96xf32>
    %37 = vector.broadcast %6 : vector<1x96xf32> to vector<16x96xf32>
    %38 = arith.addf %36, %37 : vector<16x96xf32>
    %39 = vector.shape_cast %38 : vector<16x96xf32> to vector<2x8x96xf32>
    %40 = vector.extract_strided_slice %39 {offsets = [0, 0, 0], sizes = [2, 8, 8], strides = [1, 1, 1]} : vector<2x8x96xf32> to vector<2x8x8xf32>
    %41 = vector.extract_strided_slice %39 {offsets = [0, 0, 8], sizes = [2, 8, 8], strides = [1, 1, 1]} : vector<2x8x96xf32> to vector<2x8x8xf32>
    %42 = vector.extract_strided_slice %39 {offsets = [0, 0, 16], sizes = [2, 8, 8], strides = [1, 1, 1]} : vector<2x8x96xf32> to vector<2x8x8xf32>
    %43 = vector.extract_strided_slice %39 {offsets = [0, 0, 24], sizes = [2, 8, 8], strides = [1, 1, 1]} : vector<2x8x96xf32> to vector<2x8x8xf32>
    %44 = tpu.concatenate %40, %41, %42, %43 in 0 : vector<2x8x8xf32>, vector<2x8x8xf32>, vector<2x8x8xf32>, vector<2x8x8xf32> -> vector<8x8x8xf32>
    %45 = vector.extract_strided_slice %39 {offsets = [0, 0, 32], sizes = [2, 8, 8], strides = [1, 1, 1]} : vector<2x8x96xf32> to vector<2x8x8xf32>
    %46 = vector.extract_strided_slice %39 {offsets = [0, 0, 40], sizes = [2, 8, 8], strides = [1, 1, 1]} : vector<2x8x96xf32> to vector<2x8x8xf32>
    %47 = vector.extract_strided_slice %39 {offsets = [0, 0, 48], sizes = [2, 8, 8], strides = [1, 1, 1]} : vector<2x8x96xf32> to vector<2x8x8xf32>
    %48 = vector.extract_strided_slice %39 {offsets = [0, 0, 56], sizes = [2, 8, 8], strides = [1, 1, 1]} : vector<2x8x96xf32> to vector<2x8x8xf32>
    %49 = tpu.concatenate %45, %46, %47, %48 in 0 : vector<2x8x8xf32>, vector<2x8x8xf32>, vector<2x8x8xf32>, vector<2x8x8xf32> -> vector<8x8x8xf32>
    %50 = vector.extract_strided_slice %39 {offsets = [0, 0, 64], sizes = [2, 8, 8], strides = [1, 1, 1]} : vector<2x8x96xf32> to vector<2x8x8xf32>
    %51 = vector.extract_strided_slice %39 {offsets = [0, 0, 72], sizes = [2, 8, 8], strides = [1, 1, 1]} : vector<2x8x96xf32> to vector<2x8x8xf32>
    %52 = vector.extract_strided_slice %39 {offsets = [0, 0, 80], sizes = [2, 8, 8], strides = [1, 1, 1]} : vector<2x8x96xf32> to vector<2x8x8xf32>
    %53 = vector.extract_strided_slice %39 {offsets = [0, 0, 88], sizes = [2, 8, 8], strides = [1, 1, 1]} : vector<2x8x96xf32> to vector<2x8x8xf32>
    %54 = tpu.concatenate %50, %51, %52, %53 in 0 : vector<2x8x8xf32>, vector<2x8x8xf32>, vector<2x8x8xf32>, vector<2x8x8xf32> -> vector<8x8x8xf32>
    %c0_20 = arith.constant 0 : index
    %c0_21 = arith.constant 0 : index
    %c0_22 = arith.constant 0 : index
    %55 = vector.load %arg1[%c0_20, %c0_21, %c0_22] : memref<2x1x8xf32, #tpu.memory_space<vmem>>, vector<2x1x8xf32>
    %cst_23 = arith.constant 0.000000e+00 : f32
    %56 = vector.broadcast %cst_23 : f32 to vector<2x1x8xf32>
    %57 = arith.cmpf oeq, %55, %56 : vector<2x1x8xf32>
    %cst_24 = arith.constant -1.000000e+09 : f32
    %cst_25 = arith.constant 0.000000e+00 : f32
    %58 = vector.broadcast %cst_24 : f32 to vector<2x1x8xf32>
    %59 = vector.broadcast %cst_25 : f32 to vector<2x1x8xf32>
    %60 = arith.select %57, %58, %59 : vector<2x1x8xi1>, vector<2x1x8xf32>
    %61 = tpu.concatenate %60, %60, %60, %60 in 0 : vector<2x1x8xf32>, vector<2x1x8xf32>, vector<2x1x8xf32>, vector<2x1x8xf32> -> vector<8x1x8xf32>
    "tpu.trace_start"() <{level = 10 : i32, message = "bqd,bkd->bqk"}> : () -> ()
    %cst_26 = arith.constant dense<0.000000e+00> : vector<8x8x8xf32>
    %62 = tpu.matmul %44, %49, %cst_26 {dimension_numbers = #tpu.dot_dimension_numbers<[2], [2], [1], [1], [0, 0, 0, 1, 1, 1], [0], [0]>} : vector<8x8x8xf32>, vector<8x8x8xf32>, vector<8x8x8xf32> -> vector<8x8x8xf32>
    "tpu.trace_stop"() : () -> ()
    %63 = vector.broadcast %61 : vector<8x1x8xf32> to vector<8x8x8xf32>
    %64 = arith.addf %62, %63 : vector<8x8x8xf32>
    %cst_27 = arith.constant dense<0xFF800000> : vector<8x8xf32>
    %65 = vector.multi_reduction <maximumf>, %64, %cst_27 [2] : vector<8x8x8xf32> to vector<8x8xf32>
    %66 = vector.shape_cast %65 : vector<8x8xf32> to vector<8x8x1xf32>
    %67 = vector.broadcast %66 : vector<8x8x1xf32> to vector<8x8x8xf32>
    %68 = arith.subf %64, %67 : vector<8x8x8xf32>
    %69 = math.exp %68 : vector<8x8x8xf32>
    %cst_28 = arith.constant dense<0.000000e+00> : vector<8x8xf32>
    %70 = vector.multi_reduction <add>, %69, %cst_28 [2] : vector<8x8x8xf32> to vector<8x8xf32>
    %71 = vector.shape_cast %70 : vector<8x8xf32> to vector<8x8x1xf32>
    %72 = vector.broadcast %71 : vector<8x8x1xf32> to vector<8x8x8xf32>
    %73 = arith.divf %69, %72 : vector<8x8x8xf32>
    "tpu.trace_start"() <{level = 10 : i32, message = "bqk,bkd->bqd"}> : () -> ()
    %cst_29 = arith.constant dense<0.000000e+00> : vector<8x8x8xf32>
    %74 = tpu.matmul %73, %54, %cst_29 {dimension_numbers = #tpu.dot_dimension_numbers<[2], [1], [1], [2], [0, 0, 0, 1, 1, 2], [0], [0]>} : vector<8x8x8xf32>, vector<8x8x8xf32>, vector<8x8x8xf32> -> vector<8x8x8xf32>
    "tpu.trace_stop"() : () -> ()
    %75 = vector.extract_strided_slice %74 {offsets = [0, 0, 0], sizes = [2, 8, 8], strides = [1, 1, 1]} : vector<8x8x8xf32> to vector<2x8x8xf32>
    %76 = vector.extract_strided_slice %74 {offsets = [2, 0, 0], sizes = [2, 8, 8], strides = [1, 1, 1]} : vector<8x8x8xf32> to vector<2x8x8xf32>
    %77 = vector.extract_strided_slice %74 {offsets = [4, 0, 0], sizes = [2, 8, 8], strides = [1, 1, 1]} : vector<8x8x8xf32> to vector<2x8x8xf32>
    %78 = vector.extract_strided_slice %74 {offsets = [6, 0, 0], sizes = [2, 8, 8], strides = [1, 1, 1]} : vector<8x8x8xf32> to vector<2x8x8xf32>
    %79 = tpu.concatenate %75, %76, %77, %78 in 2 : vector<2x8x8xf32>, vector<2x8x8xf32>, vector<2x8x8xf32>, vector<2x8x8xf32> -> vector<2x8x32xf32>
    %80 = vector.shape_cast %79 : vector<2x8x32xf32> to vector<16x32xf32>
    %cst_30 = arith.constant dense<0.000000e+00> : vector<16x32xf32>
    %81 = tpu.matmul %80, %3, %cst_30 {dimension_numbers = #tpu.dot_dimension_numbers<[1], [0], [0], [1], [0, 0, 1, 1], [], []>} : vector<16x32xf32>, vector<32x32xf32>, vector<16x32xf32> -> vector<16x32xf32>
    %82 = vector.broadcast %7 : vector<1x32xf32> to vector<16x32xf32>
    %83 = arith.addf %81, %82 : vector<16x32xf32>
    %84 = arith.addf %1, %83 : vector<16x32xf32>
    %cst_31 = arith.constant dense<0.000000e+00> : vector<16xf32>
    %85 = vector.multi_reduction <add>, %84, %cst_31 [1] : vector<16x32xf32> to vector<16xf32>
    %86 = vector.shape_cast %85 : vector<16xf32> to vector<16x1xf32>
    %cst_32 = arith.constant 3.200000e+01 : f32
    %87 = vector.broadcast %cst_32 : f32 to vector<16x1xf32>
    %88 = arith.divf %86, %87 : vector<16x1xf32>
    %89 = vector.broadcast %88 : vector<16x1xf32> to vector<16x32xf32>
    %90 = arith.subf %84, %89 : vector<16x32xf32>
    %91 = arith.mulf %90, %90 : vector<16x32xf32>
    %cst_33 = arith.constant dense<0.000000e+00> : vector<16xf32>
    %92 = vector.multi_reduction <add>, %91, %cst_33 [1] : vector<16x32xf32> to vector<16xf32>
    %93 = vector.shape_cast %92 : vector<16xf32> to vector<16x1xf32>
    %cst_34 = arith.constant 3.200000e+01 : f32
    %94 = vector.broadcast %cst_34 : f32 to vector<16x1xf32>
    %95 = arith.divf %93, %94 : vector<16x1xf32>
    %96 = vector.broadcast %88 : vector<16x1xf32> to vector<16x32xf32>
    %97 = arith.subf %84, %96 : vector<16x32xf32>
    %cst_35 = arith.constant 9.99999974E-6 : f32
    %98 = vector.broadcast %cst_35 : f32 to vector<16x1xf32>
    %99 = arith.addf %95, %98 : vector<16x1xf32>
    %100 = math.rsqrt %99 : vector<16x1xf32>
    %101 = vector.broadcast %100 : vector<16x1xf32> to vector<16x32xf32>
    %102 = arith.mulf %97, %101 : vector<16x32xf32>
    %103 = vector.broadcast %12 : vector<1x32xf32> to vector<16x32xf32>
    %104 = arith.mulf %102, %103 : vector<16x32xf32>
    %105 = vector.broadcast %13 : vector<1x32xf32> to vector<16x32xf32>
    %106 = arith.addf %104, %105 : vector<16x32xf32>
    %cst_36 = arith.constant dense<0.000000e+00> : vector<16x64xf32>
    %107 = tpu.matmul %106, %4, %cst_36 {dimension_numbers = #tpu.dot_dimension_numbers<[1], [0], [0], [1], [0, 0, 1, 1], [], []>} : vector<16x32xf32>, vector<32x64xf32>, vector<16x64xf32> -> vector<16x64xf32>
    %108 = vector.broadcast %8 : vector<1x64xf32> to vector<16x64xf32>
    %109 = arith.addf %107, %108 : vector<16x64xf32>
    %cst_37 = arith.constant 0.000000e+00 : f32
    %110 = vector.broadcast %cst_37 : f32 to vector<16x64xf32>
    %111 = arith.maximumf %109, %110 : vector<16x64xf32>
    %cst_38 = arith.constant dense<0.000000e+00> : vector<16x32xf32>
    %112 = tpu.matmul %111, %5, %cst_38 {dimension_numbers = #tpu.dot_dimension_numbers<[1], [0], [0], [1], [0, 0, 1, 1], [], []>} : vector<16x64xf32>, vector<64x32xf32>, vector<16x32xf32> -> vector<16x32xf32>
    %113 = vector.broadcast %9 : vector<1x32xf32> to vector<16x32xf32>
    %114 = arith.addf %112, %113 : vector<16x32xf32>
    %115 = arith.addf %84, %114 : vector<16x32xf32>
    %116 = vector.shape_cast %115 : vector<16x32xf32> to vector<2x8x32xf32>
    %c0_39 = arith.constant 0 : index
    %c0_40 = arith.constant 0 : index
    %c0_41 = arith.constant 0 : index
    %117 = vector.load %arg3[%c0_39, %c0_40, %c0_41] : memref<2x8x32xf32, #tpu.memory_space<vmem>>, vector<2x8x32xf32>
    tpu.vector_store %arg3[%c0_39, %c0_40, %c0_41], %116 {strides = array<i32>} : memref<2x8x32xf32, #tpu.memory_space<vmem>>, vector<2x8x32xf32>,
    return
  }
}

</mosaic_0001>

<llo_original>
// kernel: encoder_block.1
$region0: #{encoder_block.1}
  #allocation0 [shape = 'u32[]', space=smem, size = 0x4, offset = 0x4, fixed_abs, tag = 'smem constant byte address 0x4 - core index']
  #allocation1 [shape = 'u32[72,128]{1,0:T(1,128)}', space=vmem, size = 0x9000, scoped, tag = 'internal scratch']
  %s0 = inlined_call_operand.hbm [shape: f32[2,8,32], index: 0, kind: input, shape index: {}]
  %s1 = inlined_call_operand.hbm [shape: f32[2,1,8], index: 1, kind: input, shape index: {}]
  %s2 = inlined_call_operand.hbm [shape: f32[168,128], index: 2, kind: input, shape index: {}]
  %s3 = inlined_call_operand.hbm [shape: f32[2,8,32], index: 3, kind: output, shape index: {}]
  %s4 = sld [smem:[#allocation0]]
  $region34: #{encoder_block.1} parent=0
    _
  %s6 = ssub.s32 1, %s4
  %s7 = scalar_select 0, %s6, %s4
  $region1: #{encoder_block.1} parent=0
    #allocation2 [shape = 'u8[8192]{0}', space=vmem, size = 0x2000, scoped, tag = 'input window, operand 0, single buffered']
    #allocation3 [shape = 's32[1]{0}', space=sflag, size = 0x4, scoped, tag = 'scoped memory for encoder_block.1']
    #allocation4 [shape = 's32[1]{0}', space=sflag, size = 0x4, scoped, tag = 'scoped memory for encoder_block.1']
    #allocation5 [shape = 'u8[1024]{0}', space=vmem, size = 0x400, scoped, tag = 'input window, operand 1, single buffered']
    #allocation6 [shape = 's32[1]{0}', space=sflag, size = 0x4, scoped, tag = 'scoped memory for encoder_block.1']
    #allocation7 [shape = 'u8[86016]{0}', space=vmem, size = 0x15000, scoped, tag = 'input window, operand 2, single buffered']
    #allocation8 [shape = 'u8[8192]{0}', space=vmem, size = 0x2000, scoped, tag = 'output window, operand 0, single buffered']
    %8 = vsyncpa [#allocation3], 0
    %9 = vsyncpa [#allocation6], 0
    %10 = vsyncpa [#allocation4], 0
    // Predicated region
    $region2: #{encoder_block.1} parent=1 // pred_check
      _
    $region3: #{encoder_block.1} parent=1 // pred_check_branch
      %12 = sbr.rel (0) target = $region5
    $region4: #{encoder_block.1} parent=1 // pred_region
      %14 = vsyncadd [#allocation3], 0
      %s15 = sshll.u32 %s0, 4
      %s16 = int_to_ptr.hbm [resolvable:$true] %s15
      %s17 = sshll.u32 [#allocation2], 4
      %s18 = int_to_ptr.vmem [resolvable:$true] %s17
      %23 = dma.hbm_to_vmem [thread:$0]  %s16, 256, %s18, [#allocation3], 128, 128, 8
    $region5: #{encoder_block.1} parent=1 // pred_fallthru
      _
    // Predicated region
    $region6: #{encoder_block.1} parent=1 // pred_check
      _
    $region7: #{encoder_block.1} parent=1 // pred_check_branch
      %25 = sbr.rel (0) target = $region9
    $region8: #{encoder_block.1} parent=1 // pred_region
      %27 = vsyncadd [#allocation6], 0
      %s28 = sshll.u32 %s1, 4
      %s29 = int_to_ptr.hbm [resolvable:$true] %s28
      %s30 = sshll.u32 [#allocation5], 4
      %s31 = int_to_ptr.vmem [resolvable:$true] %s30
      %36 = dma.hbm_to_vmem [thread:$0]  %s29, 32, %s31, [#allocation6], 16, 16, 1
    $region9: #{encoder_block.1} parent=1 // pred_fallthru
      _
    // Predicated region
    $region10: #{encoder_block.1} parent=1 // pred_check
      _
    $region11: #{encoder_block.1} parent=1 // pred_check_branch
      %38 = sbr.rel (0) target = $region13
    $region12: #{encoder_block.1} parent=1 // pred_region
      %40 = vsyncadd [#allocation6], 0
      %s41 = sshll.u32 %s2, 4
      %s42 = int_to_ptr.hbm [resolvable:$true] %s41
      %s43 = sshll.u32 [#allocation7], 4
      %s44 = int_to_ptr.vmem [resolvable:$true] %s43
      %49 = dma.hbm_to_vmem [thread:$0]  %s42, 2688, %s44, [#allocation6], 128, 128, 8
    $region13: #{encoder_block.1} parent=1 // pred_fallthru
      _
    // Predicated region
    $region14: #{encoder_block.1} parent=1 // pred_check
      _
    $region15: #{encoder_block.1} parent=1 // pred_check_branch
      %51 = sbr.rel (0) target = $region17
    $region16: #{encoder_block.1} parent=1 // pred_region
      %53 = dma.done [#allocation3], 256
    $region17: #{encoder_block.1} parent=1 // pred_fallthru
      _
    // Predicated region
    $region18: #{encoder_block.1} parent=1 // pred_check
      _
    $region19: #{encoder_block.1} parent=1 // pred_check_branch
      %55 = sbr.rel (0) target = $region21
    $region20: #{encoder_block.1} parent=1 // pred_region
      %57 = dma.done [#allocation6], 32
    $region21: #{encoder_block.1} parent=1 // pred_fallthru
      _
    // Predicated region
    $region22: #{encoder_block.1} parent=1 // pred_check
      _
    $region23: #{encoder_block.1} parent=1 // pred_check_branch
      %59 = sbr.rel (0) target = $region25
    $region24: #{encoder_block.1} parent=1 // pred_region
      %61 = dma.done [#allocation6], 2688
    $region25: #{encoder_block.1} parent=1 // pred_fallthru
      _
    %v62 = vld [vmem:[#allocation2] sm:$0xff]
    %v63 = vld [vmem:[#allocation2 + $0x8] sm:$0xff]
    %v64 = vld [vmem:[#allocation7] sm:$0xff]
    %v65 = vld [vmem:[#allocation7 + $0x8] sm:$0xff]
    %v66 = vld [vmem:[#allocation7 + $0x10] sm:$0xff]
    %v67 = vld [vmem:[#allocation7 + $0x18] sm:$0xff]
    %v68 = vld [vmem:[#allocation7 + $0x20] sm:$0xff]
    %v69 = vld [vmem:[#allocation7 + $0x28] sm:$0xff]
    %v70 = vld [vmem:[#allocation7 + $0x30] sm:$0xff]
    %v71 = vld [vmem:[#allocation7 + $0x38] sm:$0xff]
    %v72 = vld [vmem:[#allocation7 + $0x40] sm:$0xff]
    %v73 = vld [vmem:[#allocation7 + $0x48] sm:$0xff]
    %v74 = vld [vmem:[#allocation7 + $0x50] sm:$0xff]
    %v75 = vld [vmem:[#allocation7 + $0x58] sm:$0xff]
    %v76 = vld [vmem:[#allocation7 + $0x60] sm:$0xff]
    %v77 = vld [vmem:[#allocation7 + $0x68] sm:$0xff]
    %v78 = vld [vmem:[#allocation7 + $0x70] sm:$0xff]
    %v79 = vld [vmem:[#allocation7 + $0x78] sm:$0xff]
    %v80 = vld [vmem:[#allocation7 + $0x80] sm:$0xff]
    %v81 = vld [vmem:[#allocation7 + $0x88] sm:$0xff]
    %v82 = vld [vmem:[#allocation7 + $0x90] sm:$0xff]
    %v83 = vld [vmem:[#allocation7 + $0x98] sm:$0xff]
    %v84 = vld [vmem:[#allocation7 + $0xa0] sm:$0x1]
    %v85 = vld [vmem:[#allocation7 + $0xa1] sm:$0x1]
    %v86 = vld [vmem:[#allocation7 + $0xa2] sm:$0x1]
    %v87 = vld [vmem:[#allocation7 + $0xa3] sm:$0x1]
    %v88 = vld [vmem:[#allocation7 + $0xa4] sm:$0x1]
    %v89 = vld [vmem:[#allocation7 + $0xa5] sm:$0x1]
    %v90 = vld [vmem:[#allocation7 + $0xa6] sm:$0x1]
    %v91 = vld [vmem:[#allocation7 + $0xa7] sm:$0x1]
    %vm92 = vcmask 261120
    %v93 = vsel %vm92, %v62, 0.0
    %94 = vadd.xlane.f32.xlu0 %v93
    %v95 = vpop.xlane.xlu0 %94
    %v96 = vsel %vm92, %v63, 0.0
    %97 = vadd.xlane.f32.xlu0 %v96
    %v98 = vpop.xlane.xlu0 %97
    %v99 = vrcp.pop 32.0
    %v100 = vmul.f32 32.0, %v99
    %v101 = vsub.f32 1.0, %v100
    %v102 = vmul.f32 %v99, %v101
    %v103 = vadd.f32 %v99, %v102
    %vm104 = vweird.f32 %v99
    %v105 = vsel %vm104, %v99, %v103
    %v106 = vmul.f32 %v95, %v105
    %v107 = vmul.f32 %v98, %v105
    %v108 = vsub.f32 %v62, %v106
    %v109 = vsub.f32 %v63, %v107
    %v110 = vmul.f32 %v108, %v108
    %v111 = vmul.f32 %v109, %v109
    %v112 = vsel %vm92, %v110, 0.0
    %113 = vadd.xlane.f32.xlu0 %v112
    %v114 = vpop.xlane.xlu0 %113
    %v115 = vsel %vm92, %v111, 0.0
    %116 = vadd.xlane.f32.xlu0 %v115
    %v117 = vpop.xlane.xlu0 %116
    %v118 = vmul.f32 %v114, %v105
    %v119 = vmul.f32 %v117, %v105
    %v120 = vadd.f32 %v118, 1e-05
    %v121 = vadd.f32 %v119, 1e-05
    %v122 = vrsqrt.pop %v120
    %v123 = vmul.f32 %v122, %v120
    %v124 = vmul.f32 %v123, %v122
    %v125 = vmul.f32 0.5, %v124
    %v126 = vsub.f32 1.5, %v125
    %v127 = vmul.f32 %v122, %v126
    %vm128 = vweird.f32 %v120
    %vm129 = vweird.f32 %v122
    %vm130 = vmor %vm128, %vm129
    %v131 = vsel %vm130, %v122, %v127
    %v132 = vrsqrt.pop %v121
    %v133 = vmul.f32 %v132, %v121
    %v134 = vmul.f32 %v133, %v132
    %v135 = vmul.f32 0.5, %v134
    %v136 = vsub.f32 1.5, %v135
    %v137 = vmul.f32 %v132, %v136
    %vm138 = vweird.f32 %v121
    %vm139 = vweird.f32 %v132
    %vm140 = vmor %vm138, %vm139
    %v141 = vsel %vm140, %v132, %v137
    %v142 = vmul.f32 %v108, %v131
    %v143 = vmul.f32 %v109, %v141
    %v144 = vperm.slane %v88, 0
    %v145 = vmul.f32 %v142, %v144
    %v146 = vmul.f32 %v143, %v144
    %v147 = vperm.slane %v89, 0
    %v148 = vadd.f32 %v145, %v147
    %v149 = vadd.f32 %v146, %v147
    %v150 = vperm.slane %v84, 0
    %v152 = vsel %vm92, %v148, 0
    %v155 = vsel %vm92, %v149, 0
    %157 = vmatpush.msra.mxu0 0.0
    %158 = vmatpush.msra.mxu0 0.0
    %159 = vmatpush.msra.mxu0 0.0
    %160 = vmatpush.msra.mxu0 0.0
    %161 = vmatpush.msra.mxu0 0.0
    %162 = vmatpush.msra.mxu0 0.0
    %163 = vmatpush.msra.mxu0 0.0
    %164 = vmatpush.msra.mxu0 0.0
    %165 = vmatpush.msra.mxu0 0.0
    %166 = vmatpush.msra.mxu0 0.0
    %167 = vmatpush.msra.mxu0 0.0
    %168 = vmatpush.msra.mxu0 0.0
    %169 = vmatpush.msra.mxu0 %v67
    %170 = vmatpush.msra.mxu0 %v66
    %171 = vmatpush.msra.mxu0 %v65
    %172 = vmatpush.msra.mxu0 %v64
    %173 = vmatmul.f32.gmra.mxu0 %v152
    %v174 = vpop.f32.mrf.mxu0
    %v175 = vadd.f32 %v150, %v174
    %176 = vmatmul.f32.gmra.mxu0 %v155
    %v177 = vpop.f32.mrf.mxu0
    %v178 = vadd.f32 %v150, %v177
    %179 = vdwg.mxu0
    %182 = vrot.lane.b32.xlu0 %v175, 120
    %v183 = vpop.permute.xlu0 %182
    %184 = vrot.lane.b32.xlu0 %v178, 120
    %v185 = vpop.permute.xlu0 %184
    %186 = vrot.lane.b32.xlu0 %v175, 112
    %v187 = vpop.permute.xlu0 %186
    %188 = vrot.lane.b32.xlu0 %v178, 112
    %v189 = vpop.permute.xlu0 %188
    %190 = vrot.lane.b32.xlu0 %v175, 104
    %v191 = vpop.permute.xlu0 %190
    %192 = vrot.lane.b32.xlu0 %v178, 104
    %v193 = vpop.permute.xlu0 %192
    %v194 = vld [vmem:[#allocation5] sm:$0x1]
    %v195 = vld [vmem:[#allocation5 + $0x1] sm:$0x1]
    %vm196 = vcmp.eq.f32.partialorder %v194, 0.0
    %vm197 = vcmp.eq.f32.partialorder %v195, 0.0
    %v198 = vsel %vm196, -1e+09, 0.0
    %v199 = vsel %vm197, -1e+09, 0.0
    %v202 = vperm.slane %v198, 0
    %v203 = vperm.slane %v199, 0
    %206 = vrot.lane.b32.xlu0 %v175, 96
    %v207 = vpop.permute.xlu0 %206
    %vm208 = vcmask 64512
    %v209 = vsel %vm208, %v175, 0
    %v211 = vsel %vm208, %v207, 0
    %213 = vmatpush.xpose.msra.mxu0 0.0
    %214 = vmatpush.xpose.msra.mxu0 0.0
    %215 = vmatpush.xpose.msra.mxu0 0.0
    %216 = vmatpush.xpose.msra.mxu0 0.0
    %217 = vmatpush.xpose.msra.mxu0 0.0
    %218 = vmatpush.xpose.msra.mxu0 0.0
    %219 = vmatpush.xpose.msra.mxu0 0.0
    %220 = vmatpush.xpose.msra.mxu0 0.0
    %221 = vmatpush.xpose.msra.mxu0 0.0
    %222 = vmatpush.xpose.msra.mxu0 0.0
    %223 = vmatpush.xpose.msra.mxu0 0.0
    %224 = vmatpush.xpose.msra.mxu0 0.0
    %225 = vmatpush.xpose.msra.mxu0 0.0
    %226 = vmatpush.xpose.msra.mxu0 0.0
    %227 = vmatpush.xpose.msra.mxu0 0.0
    %228 = vmatpush.xpose.msra.mxu0 %v211
    %229 = vmatmul.f32.gmra.mxu0 %v209
    %v230 = vpop.f32.mrf.mxu0
    %v231 = vadd.f32 %v202, %v230
    %232 = vdwg.mxu0
    %233 = vrot.lane.b32.xlu0 %v178, 96
    %v234 = vpop.permute.xlu0 %233
    %v235 = vsel %vm208, %v178, 0
    %v237 = vsel %vm208, %v234, 0
    %239 = vmatpush.xpose.msra.mxu0 0.0
    %240 = vmatpush.xpose.msra.mxu0 0.0
    %241 = vmatpush.xpose.msra.mxu0 0.0
    %242 = vmatpush.xpose.msra.mxu0 0.0
    %243 = vmatpush.xpose.msra.mxu0 0.0
    %244 = vmatpush.xpose.msra.mxu0 0.0
    %245 = vmatpush.xpose.msra.mxu0 0.0
    %246 = vmatpush.xpose.msra.mxu0 0.0
    %247 = vmatpush.xpose.msra.mxu0 0.0
    %248 = vmatpush.xpose.msra.mxu0 0.0
    %249 = vmatpush.xpose.msra.mxu0 0.0
    %250 = vmatpush.xpose.msra.mxu0 0.0
    %251 = vmatpush.xpose.msra.mxu0 0.0
    %252 = vmatpush.xpose.msra.mxu0 0.0
    %253 = vmatpush.xpose.msra.mxu0 0.0
    %254 = vmatpush.xpose.msra.mxu0 %v237
    %255 = vmatmul.f32.gmra.mxu0 %v235
    %v256 = vpop.f32.mrf.mxu0
    %v257 = vadd.f32 %v203, %v256
    %258 = vdwg.mxu0
    %259 = vrot.lane.b32.xlu0 %v183, 96
    %v260 = vpop.permute.xlu0 %259
    %v261 = vsel %vm208, %v183, 0
    %v263 = vsel %vm208, %v260, 0
    %265 = vmatpush.xpose.msra.mxu0 0.0
    %266 = vmatpush.xpose.msra.mxu0 0.0
    %267 = vmatpush.xpose.msra.mxu0 0.0
    %268 = vmatpush.xpose.msra.mxu0 0.0
    %269 = vmatpush.xpose.msra.mxu0 0.0
    %270 = vmatpush.xpose.msra.mxu0 0.0
    %271 = vmatpush.xpose.msra.mxu0 0.0
    %272 = vmatpush.xpose.msra.mxu0 0.0
    %273 = vmatpush.xpose.msra.mxu0 0.0
    %274 = vmatpush.xpose.msra.mxu0 0.0
    %275 = vmatpush.xpose.msra.mxu0 0.0
    %276 = vmatpush.xpose.msra.mxu0 0.0
    %277 = vmatpush.xpose.msra.mxu0 0.0
    %278 = vmatpush.xpose.msra.mxu0 0.0
    %279 = vmatpush.xpose.msra.mxu0 0.0
    %280 = vmatpush.xpose.msra.mxu0 %v263
    %281 = vmatmul.f32.gmra.mxu0 %v261
    %v282 = vpop.f32.mrf.mxu0
    %v283 = vadd.f32 %v202, %v282
    %284 = vdwg.mxu0
    %285 = vrot.lane.b32.xlu0 %v185, 96
    %v286 = vpop.permute.xlu0 %285
    %v287 = vsel %vm208, %v185, 0
    %v289 = vsel %vm208, %v286, 0
    %291 = vmatpush.xpose.msra.mxu0 0.0
    %292 = vmatpush.xpose.msra.mxu0 0.0
    %293 = vmatpush.xpose.msra.mxu0 0.0
    %294 = vmatpush.xpose.msra.mxu0 0.0
    %295 = vmatpush.xpose.msra.mxu0 0.0
    %296 = vmatpush.xpose.msra.mxu0 0.0
    %297 = vmatpush.xpose.msra.mxu0 0.0
    %298 = vmatpush.xpose.msra.mxu0 0.0
    %299 = vmatpush.xpose.msra.mxu0 0.0
    %300 = vmatpush.xpose.msra.mxu0 0.0
    %301 = vmatpush.xpose.msra.mxu0 0.0
    %302 = vmatpush.xpose.msra.mxu0 0.0
    %303 = vmatpush.xpose.msra.mxu0 0.0
    %304 = vmatpush.xpose.msra.mxu0 0.0
    %305 = vmatpush.xpose.msra.mxu0 0.0
    %306 = vmatpush.xpose.msra.mxu0 %v289
    %307 = vmatmul.f32.gmra.mxu0 %v287
    %v308 = vpop.f32.mrf.mxu0
    %v309 = vadd.f32 %v203, %v308
    %310 = vdwg.mxu0
    %311 = vrot.lane.b32.xlu0 %v187, 96
    %v312 = vpop.permute.xlu0 %311
    %v313 = vsel %vm208, %v187, 0
    %v315 = vsel %vm208, %v312, 0
    %317 = vmatpush.xpose.msra.mxu0 0.0
    %318 = vmatpush.xpose.msra.mxu0 0.0
    %319 = vmatpush.xpose.msra.mxu0 0.0
    %320 = vmatpush.xpose.msra.mxu0 0.0
    %321 = vmatpush.xpose.msra.mxu0 0.0
    %322 = vmatpush.xpose.msra.mxu0 0.0
    %323 = vmatpush.xpose.msra.mxu0 0.0
    %324 = vmatpush.xpose.msra.mxu0 0.0
    %325 = vmatpush.xpose.msra.mxu0 0.0
    %326 = vmatpush.xpose.msra.mxu0 0.0
    %327 = vmatpush.xpose.msra.mxu0 0.0
    %328 = vmatpush.xpose.msra.mxu0 0.0
    %329 = vmatpush.xpose.msra.mxu0 0.0
    %330 = vmatpush.xpose.msra.mxu0 0.0
    %331 = vmatpush.xpose.msra.mxu0 0.0
    %332 = vmatpush.xpose.msra.mxu0 %v315
    %333 = vmatmul.f32.gmra.mxu0 %v313
    %v334 = vpop.f32.mrf.mxu0
    %v335 = vadd.f32 %v202, %v334
    %336 = vdwg.mxu0
    %337 = vrot.lane.b32.xlu0 %v189, 96
    %v338 = vpop.permute.xlu0 %337
    %v339 = vsel %vm208, %v189, 0
    %v341 = vsel %vm208, %v338, 0
    %343 = vmatpush.xpose.msra.mxu0 0.0
    %344 = vmatpush.xpose.msra.mxu0 0.0
    %345 = vmatpush.xpose.msra.mxu0 0.0
    %346 = vmatpush.xpose.msra.mxu0 0.0
    %347 = vmatpush.xpose.msra.mxu0 0.0
    %348 = vmatpush.xpose.msra.mxu0 0.0
    %349 = vmatpush.xpose.msra.mxu0 0.0
    %350 = vmatpush.xpose.msra.mxu0 0.0
    %351 = vmatpush.xpose.msra.mxu0 0.0
    %352 = vmatpush.xpose.msra.mxu0 0.0
    %353 = vmatpush.xpose.msra.mxu0 0.0
    %354 = vmatpush.xpose.msra.mxu0 0.0
    %355 = vmatpush.xpose.msra.mxu0 0.0
    %356 = vmatpush.xpose.msra.mxu0 0.0
    %357 = vmatpush.xpose.msra.mxu0 0.0
    %358 = vmatpush.xpose.msra.mxu0 %v341
    %359 = vmatmul.f32.gmra.mxu0 %v339
    %v360 = vpop.f32.mrf.mxu0
    %v361 = vadd.f32 %v203, %v360
    %362 = vdwg.mxu0
    %363 = vrot.lane.b32.xlu0 %v191, 96
    %v364 = vpop.permute.xlu0 %363
    %v365 = vsel %vm208, %v191, 0
    %v367 = vsel %vm208, %v364, 0
    %369 = vmatpush.xpose.msra.mxu0 0.0
    %370 = vmatpush.xpose.msra.mxu0 0.0
    %371 = vmatpush.xpose.msra.mxu0 0.0
    %372 = vmatpush.xpose.msra.mxu0 0.0
    %373 = vmatpush.xpose.msra.mxu0 0.0
    %374 = vmatpush.xpose.msra.mxu0 0.0
    %375 = vmatpush.xpose.msra.mxu0 0.0
    %376 = vmatpush.xpose.msra.mxu0 0.0
    %377 = vmatpush.xpose.msra.mxu0 0.0
    %378 = vmatpush.xpose.msra.mxu0 0.0
    %379 = vmatpush.xpose.msra.mxu0 0.0
    %380 = vmatpush.xpose.msra.mxu0 0.0
    %381 = vmatpush.xpose.msra.mxu0 0.0
    %382 = vmatpush.xpose.msra.mxu0 0.0
    %383 = vmatpush.xpose.msra.mxu0 0.0
    %384 = vmatpush.xpose.msra.mxu0 %v367
    %385 = vmatmul.f32.gmra.mxu0 %v365
    %v386 = vpop.f32.mrf.mxu0
    %v387 = vadd.f32 %v202, %v386
    %388 = vdwg.mxu0
    %389 = vrot.lane.b32.xlu0 %v193, 96
    %v390 = vpop.permute.xlu0 %389
    %v391 = vsel %vm208, %v193, 0
    %v393 = vsel %vm208, %v390, 0
    %395 = vmatpush.xpose.msra.mxu0 0.0
    %396 = vmatpush.xpose.msra.mxu0 0.0
    %397 = vmatpush.xpose.msra.mxu0 0.0
    %398 = vmatpush.xpose.msra.mxu0 0.0
    %399 = vmatpush.xpose.msra.mxu0 0.0
    %400 = vmatpush.xpose.msra.mxu0 0.0
    %401 = vmatpush.xpose.msra.mxu0 0.0
    %402 = vmatpush.xpose.msra.mxu0 0.0
    %403 = vmatpush.xpose.msra.mxu0 0.0
    %404 = vmatpush.xpose.msra.mxu0 0.0
    %405 = vmatpush.xpose.msra.mxu0 0.0
    %406 = vmatpush.xpose.msra.mxu0 0.0
    %407 = vmatpush.xpose.msra.mxu0 0.0
    %408 = vmatpush.xpose.msra.mxu0 0.0
    %409 = vmatpush.xpose.msra.mxu0 0.0
    %410 = vmatpush.xpose.msra.mxu0 %v393
    %411 = vmatmul.f32.gmra.mxu0 %v391
    %v412 = vpop.f32.mrf.mxu0
    %v413 = vadd.f32 %v203, %v412
    %414 = vdwg.mxu0
    %v415 = vsel %vm208, %v231, -inf
    %416 = vmax.xlane.f32.xlu0 %v415
    %v417 = vpop.xlane.xlu0 %416
    %v418 = vsel %vm208, %v257, -inf
    %419 = vmax.xlane.f32.xlu0 %v418
    %v420 = vpop.xlane.xlu0 %419
    %v421 = vsel %vm208, %v283, -inf
    %422 = vmax.xlane.f32.xlu0 %v421
    %v423 = vpop.xlane.xlu0 %422
    %v424 = vsel %vm208, %v309, -inf
    %425 = vmax.xlane.f32.xlu0 %v424
    %v426 = vpop.xlane.xlu0 %425
    %v427 = vsel %vm208, %v335, -inf
    %428 = vmax.xlane.f32.xlu0 %v427
    %v429 = vpop.xlane.xlu0 %428
    %v430 = vsel %vm208, %v361, -inf
    %431 = vmax.xlane.f32.xlu0 %v430
    %v432 = vpop.xlane.xlu0 %431
    %v433 = vsel %vm208, %v387, -inf
    %434 = vmax.xlane.f32.xlu0 %v433
    %v435 = vpop.xlane.xlu0 %434
    %v436 = vsel %vm208, %v413, -inf
    %437 = vmax.xlane.f32.xlu0 %v436
    %v438 = vpop.xlane.xlu0 %437
    %v439 = vsub.f32 %v231, %v417
    %v440 = vsub.f32 %v257, %v420
    %v441 = vsub.f32 %v283, %v423
    %v442 = vsub.f32 %v309, %v426
    %v443 = vsub.f32 %v335, %v429
    %v444 = vsub.f32 %v361, %v432
    %v445 = vsub.f32 %v387, %v435
    %v446 = vsub.f32 %v413, %v438
    %v447 = vmul.f32 %v439, 1.442695
    %v448 = vpow.pop %v447
    %v449 = vmul.f32 %v440, 1.442695
    %v450 = vpow.pop %v449
    %v451 = vmul.f32 %v441, 1.442695
    %v452 = vpow.pop %v451
    %v453 = vmul.f32 %v442, 1.442695
    %v454 = vpow.pop %v453
    %v455 = vmul.f32 %v443, 1.442695
    %v456 = vpow.pop %v455
    %v457 = vmul.f32 %v444, 1.442695
    %v458 = vpow.pop %v457
    %v459 = vmul.f32 %v445, 1.442695
    %v460 = vpow.pop %v459
    %v461 = vmul.f32 %v446, 1.442695
    %v462 = vpow.pop %v461
    %v463 = vsel %vm208, %v448, 0.0
    %464 = vadd.xlane.f32.xlu0 %v463
    %v465 = vpop.xlane.xlu0 %464
    %v466 = vsel %vm208, %v450, 0.0
    %467 = vadd.xlane.f32.xlu0 %v466
    %v468 = vpop.xlane.xlu0 %467
    %v469 = vsel %vm208, %v452, 0.0
    %470 = vadd.xlane.f32.xlu0 %v469
    %v471 = vpop.xlane.xlu0 %470
    %v472 = vsel %vm208, %v454, 0.0
    %473 = vadd.xlane.f32.xlu0 %v472
    %v474 = vpop.xlane.xlu0 %473
    %v475 = vsel %vm208, %v456, 0.0
    %476 = vadd.xlane.f32.xlu0 %v475
    %v477 = vpop.xlane.xlu0 %476
    %v478 = vsel %vm208, %v458, 0.0
    %479 = vadd.xlane.f32.xlu0 %v478
    %v480 = vpop.xlane.xlu0 %479
    %v481 = vsel %vm208, %v460, 0.0
    %482 = vadd.xlane.f32.xlu0 %v481
    %v483 = vpop.xlane.xlu0 %482
    %v484 = vsel %vm208, %v462, 0.0
    %485 = vadd.xlane.f32.xlu0 %v484
    %v486 = vpop.xlane.xlu0 %485
    %v487 = vrcp.pop %v465
    %v488 = vmul.f32 %v465, %v487
    %v489 = vsub.f32 1.0, %v488
    %v490 = vmul.f32 %v487, %v489
    %v491 = vadd.f32 %v487, %v490
    %vm492 = vweird.f32 %v465
    %vm493 = vweird.f32 %v487
    %vm494 = vmor %vm492, %vm493
    %v495 = vsel %vm494, %v487, %v491
    %v496 = vand.u32 2147483647, %v465
    %vm497 = vcmp.eq.f32.partialorder %v496, 8.507059e+37
    %v498 = vand.u32 %v465, 2147483648
    %v499 = vor.u32 1.1754944e-38, %v498
    %v500 = vsel %vm497, %v499, %v495
    %v501 = vmul.f32 %v448, %v500
    %v502 = vrcp.pop %v468
    %v503 = vmul.f32 %v468, %v502
    %v504 = vsub.f32 1.0, %v503
    %v505 = vmul.f32 %v502, %v504
    %v506 = vadd.f32 %v502, %v505
    %vm507 = vweird.f32 %v468
    %vm508 = vweird.f32 %v502
    %vm509 = vmor %vm507, %vm508
    %v510 = vsel %vm509, %v502, %v506
    %v511 = vand.u32 2147483647, %v468
    %vm512 = vcmp.eq.f32.partialorder %v511, 8.507059e+37
    %v513 = vand.u32 %v468, 2147483648
    %v514 = vor.u32 1.1754944e-38, %v513
    %v515 = vsel %vm512, %v514, %v510
    %v516 = vmul.f32 %v450, %v515
    %v517 = vrcp.pop %v471
    %v518 = vmul.f32 %v471, %v517
    %v519 = vsub.f32 1.0, %v518
    %v520 = vmul.f32 %v517, %v519
    %v521 = vadd.f32 %v517, %v520
    %vm522 = vweird.f32 %v471
    %vm523 = vweird.f32 %v517
    %vm524 = vmor %vm522, %vm523
    %v525 = vsel %vm524, %v517, %v521
    %v526 = vand.u32 2147483647, %v471
    %vm527 = vcmp.eq.f32.partialorder %v526, 8.507059e+37
    %v528 = vand.u32 %v471, 2147483648
    %v529 = vor.u32 1.1754944e-38, %v528
    %v530 = vsel %vm527, %v529, %v525
    %v531 = vmul.f32 %v452, %v530
    %v532 = vrcp.pop %v474
    %v533 = vmul.f32 %v474, %v532
    %v534 = vsub.f32 1.0, %v533
    %v535 = vmul.f32 %v532, %v534
    %v536 = vadd.f32 %v532, %v535
    %vm537 = vweird.f32 %v474
    %vm538 = vweird.f32 %v532
    %vm539 = vmor %vm537, %vm538
    %v540 = vsel %vm539, %v532, %v536
    %v541 = vand.u32 2147483647, %v474
    %vm542 = vcmp.eq.f32.partialorder %v541, 8.507059e+37
    %v543 = vand.u32 %v474, 2147483648
    %v544 = vor.u32 1.1754944e-38, %v543
    %v545 = vsel %vm542, %v544, %v540
    %v546 = vmul.f32 %v454, %v545
    %v547 = vrcp.pop %v477
    %v548 = vmul.f32 %v477, %v547
    %v549 = vsub.f32 1.0, %v548
    %v550 = vmul.f32 %v547, %v549
    %v551 = vadd.f32 %v547, %v550
    %vm552 = vweird.f32 %v477
    %vm553 = vweird.f32 %v547
    %vm554 = vmor %vm552, %vm553
    %v555 = vsel %vm554, %v547, %v551
    %v556 = vand.u32 2147483647, %v477
    %vm557 = vcmp.eq.f32.partialorder %v556, 8.507059e+37
    %v558 = vand.u32 %v477, 2147483648
    %v559 = vor.u32 1.1754944e-38, %v558
    %v560 = vsel %vm557, %v559, %v555
    %v561 = vmul.f32 %v456, %v560
    %v562 = vrcp.pop %v480
    %v563 = vmul.f32 %v480, %v562
    %v564 = vsub.f32 1.0, %v563
    %v565 = vmul.f32 %v562, %v564
    %v566 = vadd.f32 %v562, %v565
    %vm567 = vweird.f32 %v480
    %vm568 = vweird.f32 %v562
    %vm569 = vmor %vm567, %vm568
    %v570 = vsel %vm569, %v562, %v566
    %v571 = vand.u32 2147483647, %v480
    %vm572 = vcmp.eq.f32.partialorder %v571, 8.507059e+37
    %v573 = vand.u32 %v480, 2147483648
    %v574 = vor.u32 1.1754944e-38, %v573
    %v575 = vsel %vm572, %v574, %v570
    %v576 = vmul.f32 %v458, %v575
    %v577 = vrcp.pop %v483
    %v578 = vmul.f32 %v483, %v577
    %v579 = vsub.f32 1.0, %v578
    %v580 = vmul.f32 %v577, %v579
    %v581 = vadd.f32 %v577, %v580
    %vm582 = vweird.f32 %v483
    %vm583 = vweird.f32 %v577
    %vm584 = vmor %vm582, %vm583
    %v585 = vsel %vm584, %v577, %v581
    %v586 = vand.u32 2147483647, %v483
    %vm587 = vcmp.eq.f32.partialorder %v586, 8.507059e+37
    %v588 = vand.u32 %v483, 2147483648
    %v589 = vor.u32 1.1754944e-38, %v588
    %v590 = vsel %vm587, %v589, %v585
    %v591 = vmul.f32 %v460, %v590
    %v592 = vrcp.pop %v486
    %v593 = vmul.f32 %v486, %v592
    %v594 = vsub.f32 1.0, %v593
    %v595 = vmul.f32 %v592, %v594
    %v596 = vadd.f32 %v592, %v595
    %vm597 = vweird.f32 %v486
    %vm598 = vweird.f32 %v592
    %vm599 = vmor %vm597, %vm598
    %v600 = vsel %vm599, %v592, %v596
    %v601 = vand.u32 2147483647, %v486
    %vm602 = vcmp.eq.f32.partialorder %v601, 8.507059e+37
    %v603 = vand.u32 %v486, 2147483648
    %v604 = vor.u32 1.1754944e-38, %v603
    %v605 = vsel %vm602, %v604, %v600
    %v606 = vmul.f32 %v462, %v605
    %607 = vrot.lane.b32.xlu0 %v175, 64
    %v608 = vpop.permute.xlu0 %607
    %v611 = vsel %vm208, %v501, 0
    %613 = vmatpush.msra.mxu0 0.0
    %614 = vmatpush.msra.mxu0 0.0
    %615 = vmatpush.msra.mxu0 0.0
    %616 = vmatpush.msra.mxu0 0.0
    %617 = vmatpush.msra.mxu0 0.0
    %618 = vmatpush.msra.mxu0 0.0
    %619 = vmatpush.msra.mxu0 0.0
    %620 = vmatpush.msra.mxu0 0.0
    %621 = vmatpush.msra.mxu0 0.0
    %622 = vmatpush.msra.mxu0 0.0
    %623 = vmatpush.msra.mxu0 0.0
    %624 = vmatpush.msra.mxu0 0.0
    %625 = vmatpush.msra.mxu0 0.0
    %626 = vmatpush.msra.mxu0 0.0
    %627 = vmatpush.msra.mxu0 0.0
    %628 = vmatpush.msra.mxu0 %v608
    %629 = vmatmul.f32.gmra.mxu0 %v611
    %v630 = vpop.f32.mrf.mxu0
    %v631 = vadd.f32 0.0, %v630
    %632 = vdwg.mxu0
    %633 = vrot.lane.b32.xlu0 %v178, 64
    %v634 = vpop.permute.xlu0 %633
    %v637 = vsel %vm208, %v516, 0
    %639 = vmatpush.msra.mxu0 0.0
    %640 = vmatpush.msra.mxu0 0.0
    %641 = vmatpush.msra.mxu0 0.0
    %642 = vmatpush.msra.mxu0 0.0
    %643 = vmatpush.msra.mxu0 0.0
    %644 = vmatpush.msra.mxu0 0.0
    %645 = vmatpush.msra.mxu0 0.0
    %646 = vmatpush.msra.mxu0 0.0
    %647 = vmatpush.msra.mxu0 0.0
    %648 = vmatpush.msra.mxu0 0.0
    %649 = vmatpush.msra.mxu0 0.0
    %650 = vmatpush.msra.mxu0 0.0
    %651 = vmatpush.msra.mxu0 0.0
    %652 = vmatpush.msra.mxu0 0.0
    %653 = vmatpush.msra.mxu0 0.0
    %654 = vmatpush.msra.mxu0 %v634
    %655 = vmatmul.f32.gmra.mxu0 %v637
    %v656 = vpop.f32.mrf.mxu0
    %v657 = vadd.f32 0.0, %v656
    %658 = vdwg.mxu0
    %659 = vrot.lane.b32.xlu0 %v183, 64
    %v660 = vpop.permute.xlu0 %659
    %v663 = vsel %vm208, %v531, 0
    %665 = vmatpush.msra.mxu0 0.0
    %666 = vmatpush.msra.mxu0 0.0
    %667 = vmatpush.msra.mxu0 0.0
    %668 = vmatpush.msra.mxu0 0.0
    %669 = vmatpush.msra.mxu0 0.0
    %670 = vmatpush.msra.mxu0 0.0
    %671 = vmatpush.msra.mxu0 0.0
    %672 = vmatpush.msra.mxu0 0.0
    %673 = vmatpush.msra.mxu0 0.0
    %674 = vmatpush.msra.mxu0 0.0
    %675 = vmatpush.msra.mxu0 0.0
    %676 = vmatpush.msra.mxu0 0.0
    %677 = vmatpush.msra.mxu0 0.0
    %678 = vmatpush.msra.mxu0 0.0
    %679 = vmatpush.msra.mxu0 0.0
    %680 = vmatpush.msra.mxu0 %v660
    %681 = vmatmul.f32.gmra.mxu0 %v663
    %v682 = vpop.f32.mrf.mxu0
    %v683 = vadd.f32 0.0, %v682
    %684 = vdwg.mxu0
    %685 = vrot.lane.b32.xlu0 %v185, 64
    %v686 = vpop.permute.xlu0 %685
    %v689 = vsel %vm208, %v546, 0
    %691 = vmatpush.msra.mxu0 0.0
    %692 = vmatpush.msra.mxu0 0.0
    %693 = vmatpush.msra.mxu0 0.0
    %694 = vmatpush.msra.mxu0 0.0
    %695 = vmatpush.msra.mxu0 0.0
    %696 = vmatpush.msra.mxu0 0.0
    %697 = vmatpush.msra.mxu0 0.0
    %698 = vmatpush.msra.mxu0 0.0
    %699 = vmatpush.msra.mxu0 0.0
    %700 = vmatpush.msra.mxu0 0.0
    %701 = vmatpush.msra.mxu0 0.0
    %702 = vmatpush.msra.mxu0 0.0
    %703 = vmatpush.msra.mxu0 0.0
    %704 = vmatpush.msra.mxu0 0.0
    %705 = vmatpush.msra.mxu0 0.0
    %706 = vmatpush.msra.mxu0 %v686
    %707 = vmatmul.f32.gmra.mxu0 %v689
    %v708 = vpop.f32.mrf.mxu0
    %v709 = vadd.f32 0.0, %v708
    %710 = vdwg.mxu0
    %711 = vrot.lane.b32.xlu0 %v187, 64
    %v712 = vpop.permute.xlu0 %711
    %v715 = vsel %vm208, %v561, 0
    %717 = vmatpush.msra.mxu0 0.0
    %718 = vmatpush.msra.mxu0 0.0
    %719 = vmatpush.msra.mxu0 0.0
    %720 = vmatpush.msra.mxu0 0.0
    %721 = vmatpush.msra.mxu0 0.0
    %722 = vmatpush.msra.mxu0 0.0
    %723 = vmatpush.msra.mxu0 0.0
    %724 = vmatpush.msra.mxu0 0.0
    %725 = vmatpush.msra.mxu0 0.0
    %726 = vmatpush.msra.mxu0 0.0
    %727 = vmatpush.msra.mxu0 0.0
    %728 = vmatpush.msra.mxu0 0.0
    %729 = vmatpush.msra.mxu0 0.0
    %730 = vmatpush.msra.mxu0 0.0
    %731 = vmatpush.msra.mxu0 0.0
    %732 = vmatpush.msra.mxu0 %v712
    %733 = vmatmul.f32.gmra.mxu0 %v715
    %v734 = vpop.f32.mrf.mxu0
    %v735 = vadd.f32 0.0, %v734
    %736 = vdwg.mxu0
    %737 = vrot.lane.b32.xlu0 %v189, 64
    %v738 = vpop.permute.xlu0 %737
    %v741 = vsel %vm208, %v576, 0
    %743 = vmatpush.msra.mxu0 0.0
    %744 = vmatpush.msra.mxu0 0.0
    %745 = vmatpush.msra.mxu0 0.0
    %746 = vmatpush.msra.mxu0 0.0
    %747 = vmatpush.msra.mxu0 0.0
    %748 = vmatpush.msra.mxu0 0.0
    %749 = vmatpush.msra.mxu0 0.0
    %750 = vmatpush.msra.mxu0 0.0
    %751 = vmatpush.msra.mxu0 0.0
    %752 = vmatpush.msra.mxu0 0.0
    %753 = vmatpush.msra.mxu0 0.0
    %754 = vmatpush.msra.mxu0 0.0
    %755 = vmatpush.msra.mxu0 0.0
    %756 = vmatpush.msra.mxu0 0.0
    %757 = vmatpush.msra.mxu0 0.0
    %758 = vmatpush.msra.mxu0 %v738
    %759 = vmatmul.f32.gmra.mxu0 %v741
    %v760 = vpop.f32.mrf.mxu0
    %v761 = vadd.f32 0.0, %v760
    %762 = vdwg.mxu0
    %763 = vrot.lane.b32.xlu0 %v191, 64
    %v764 = vpop.permute.xlu0 %763
    %v767 = vsel %vm208, %v591, 0
    %769 = vmatpush.msra.mxu0 0.0
    %770 = vmatpush.msra.mxu0 0.0
    %771 = vmatpush.msra.mxu0 0.0
    %772 = vmatpush.msra.mxu0 0.0
    %773 = vmatpush.msra.mxu0 0.0
    %774 = vmatpush.msra.mxu0 0.0
    %775 = vmatpush.msra.mxu0 0.0
    %776 = vmatpush.msra.mxu0 0.0
    %777 = vmatpush.msra.mxu0 0.0
    %778 = vmatpush.msra.mxu0 0.0
    %779 = vmatpush.msra.mxu0 0.0
    %780 = vmatpush.msra.mxu0 0.0
    %781 = vmatpush.msra.mxu0 0.0
    %782 = vmatpush.msra.mxu0 0.0
    %783 = vmatpush.msra.mxu0 0.0
    %784 = vmatpush.msra.mxu0 %v764
    %785 = vmatmul.f32.gmra.mxu0 %v767
    %v786 = vpop.f32.mrf.mxu0
    %v787 = vadd.f32 0.0, %v786
    %788 = vdwg.mxu0
    %789 = vrot.lane.b32.xlu0 %v193, 64
    %v790 = vpop.permute.xlu0 %789
    %v793 = vsel %vm208, %v606, 0
    %795 = vmatpush.msra.mxu0 0.0
    %796 = vmatpush.msra.mxu0 0.0
    %797 = vmatpush.msra.mxu0 0.0
    %798 = vmatpush.msra.mxu0 0.0
    %799 = vmatpush.msra.mxu0 0.0
    %800 = vmatpush.msra.mxu0 0.0
    %801 = vmatpush.msra.mxu0 0.0
    %802 = vmatpush.msra.mxu0 0.0
    %803 = vmatpush.msra.mxu0 0.0
    %804 = vmatpush.msra.mxu0 0.0
    %805 = vmatpush.msra.mxu0 0.0
    %806 = vmatpush.msra.mxu0 0.0
    %807 = vmatpush.msra.mxu0 0.0
    %808 = vmatpush.msra.mxu0 0.0
    %809 = vmatpush.msra.mxu0 0.0
    %810 = vmatpush.msra.mxu0 %v790
    %811 = vmatmul.f32.gmra.mxu0 %v793
    %v812 = vpop.f32.mrf.mxu0
    %v813 = vadd.f32 0.0, %v812
    %814 = vdwg.mxu0
    %817 = vrot.lane.b32.xlu0 %v683, 8
    %v818 = vpop.permute.xlu0 %817
    %819 = vrot.lane.b32.xlu0 %v709, 8
    %v820 = vpop.permute.xlu0 %819
    %825 = vrot.lane.b32.xlu0 %v735, 16
    %v826 = vpop.permute.xlu0 %825
    %827 = vrot.lane.b32.xlu0 %v761, 16
    %v828 = vpop.permute.xlu0 %827
    %833 = vrot.lane.b32.xlu0 %v787, 24
    %v834 = vpop.permute.xlu0 %833
    %835 = vrot.lane.b32.xlu0 %v813, 24
    %v836 = vpop.permute.xlu0 %835
    %v839 = vsel %vm208, %v631, %v818
    %v840 = vsel %vm208, %v657, %v820
    %vm841 = vcmask 130048
    %v842 = vsel %vm841, %v839, %v826
    %v843 = vsel %vm841, %v840, %v828
    %vm844 = vcmask 195584
    %v845 = vsel %vm844, %v842, %v834
    %v846 = vsel %vm844, %v843, %v836
    %v847 = vperm.slane %v85, 0
    %v849 = vsel %vm92, %v845, 0
    %v852 = vsel %vm92, %v846, 0
    %854 = vmatpush.msra.mxu0 0.0
    %855 = vmatpush.msra.mxu0 0.0
    %856 = vmatpush.msra.mxu0 0.0
    %857 = vmatpush.msra.mxu0 0.0
    %858 = vmatpush.msra.mxu0 0.0
    %859 = vmatpush.msra.mxu0 0.0
    %860 = vmatpush.msra.mxu0 0.0
    %861 = vmatpush.msra.mxu0 0.0
    %862 = vmatpush.msra.mxu0 0.0
    %863 = vmatpush.msra.mxu0 0.0
    %864 = vmatpush.msra.mxu0 0.0
    %865 = vmatpush.msra.mxu0 0.0
    %866 = vmatpush.msra.mxu0 %v71
    %867 = vmatpush.msra.mxu0 %v70
    %868 = vmatpush.msra.mxu0 %v69
    %869 = vmatpush.msra.mxu0 %v68
    %870 = vmatmul.f32.gmra.mxu0 %v849
    %v871 = vpop.f32.mrf.mxu0
    %v872 = vadd.f32 %v847, %v871
    %873 = vmatmul.f32.gmra.mxu0 %v852
    %v874 = vpop.f32.mrf.mxu0
    %v875 = vadd.f32 %v847, %v874
    %876 = vdwg.mxu0
    %v877 = vadd.f32 %v62, %v872
    %v878 = vadd.f32 %v63, %v875
    %v879 = vsel %vm92, %v877, 0.0
    %880 = vadd.xlane.f32.xlu0 %v879
    %v881 = vpop.xlane.xlu0 %880
    %v882 = vsel %vm92, %v878, 0.0
    %883 = vadd.xlane.f32.xlu0 %v882
    %v884 = vpop.xlane.xlu0 %883
    %v885 = vmul.f32 %v881, %v105
    %v886 = vmul.f32 %v884, %v105
    %v887 = vsub.f32 %v877, %v885
    %v888 = vsub.f32 %v878, %v886
    %v889 = vmul.f32 %v887, %v887
    %v890 = vmul.f32 %v888, %v888
    %v891 = vsel %vm92, %v889, 0.0
    %892 = vadd.xlane.f32.xlu0 %v891
    %v893 = vpop.xlane.xlu0 %892
    %v894 = vsel %vm92, %v890, 0.0
    %895 = vadd.xlane.f32.xlu0 %v894
    %v896 = vpop.xlane.xlu0 %895
    %v897 = vmul.f32 %v893, %v105
    %v898 = vmul.f32 %v896, %v105
    %v899 = vadd.f32 %v897, 1e-05
    %v900 = vadd.f32 %v898, 1e-05
    %v901 = vrsqrt.pop %v899
    %v902 = vmul.f32 %v901, %v899
    %v903 = vmul.f32 %v902, %v901
    %v904 = vmul.f32 0.5, %v903
    %v905 = vsub.f32 1.5, %v904
    %v906 = vmul.f32 %v901, %v905
    %vm907 = vweird.f32 %v899
    %vm908 = vweird.f32 %v901
    %vm909 = vmor %vm907, %vm908
    %v910 = vsel %vm909, %v901, %v906
    %v911 = vrsqrt.pop %v900
    %v912 = vmul.f32 %v911, %v900
    %v913 = vmul.f32 %v912, %v911
    %v914 = vmul.f32 0.5, %v913
    %v915 = vsub.f32 1.5, %v914
    %v916 = vmul.f32 %v911, %v915
    %vm917 = vweird.f32 %v900
    %vm918 = vweird.f32 %v911
    %vm919 = vmor %vm917, %vm918
    %v920 = vsel %vm919, %v911, %v916
    %v921 = vmul.f32 %v887, %v910
    %v922 = vmul.f32 %v888, %v920
    %v923 = vperm.slane %v90, 0
    %v924 = vmul.f32 %v921, %v923
    %v925 = vmul.f32 %v922, %v923
    %v926 = vperm.slane %v91, 0
    %v927 = vadd.f32 %v924, %v926
    %v928 = vadd.f32 %v925, %v926
    %v929 = vperm.slane %v86, 0
    %v931 = vsel %vm92, %v927, 0
    %v934 = vsel %vm92, %v928, 0
    %936 = vmatpush.msra.mxu0 0.0
    %937 = vmatpush.msra.mxu0 0.0
    %938 = vmatpush.msra.mxu0 0.0
    %939 = vmatpush.msra.mxu0 0.0
    %940 = vmatpush.msra.mxu0 0.0
    %941 = vmatpush.msra.mxu0 0.0
    %942 = vmatpush.msra.mxu0 0.0
    %943 = vmatpush.msra.mxu0 0.0
    %944 = vmatpush.msra.mxu0 0.0
    %945 = vmatpush.msra.mxu0 0.0
    %946 = vmatpush.msra.mxu0 0.0
    %947 = vmatpush.msra.mxu0 0.0
    %948 = vmatpush.msra.mxu0 %v75
    %949 = vmatpush.msra.mxu0 %v74
    %950 = vmatpush.msra.mxu0 %v73
    %951 = vmatpush.msra.mxu0 %v72
    %952 = vmatmul.f32.gmra.mxu0 %v931
    %v953 = vpop.f32.mrf.mxu0
    %v954 = vadd.f32 %v929, %v953
    %955 = vmatmul.f32.gmra.mxu0 %v934
    %v956 = vpop.f32.mrf.mxu0
    %v957 = vadd.f32 %v929, %v956
    %958 = vdwg.mxu0
    %v959 = vmax.f32 %v954, 0.0
    %v960 = vmax.f32 %v957, 0.0
    %v961 = vperm.slane %v87, 0
    %vm962 = vcmask 523264
    %v964 = vsel %vm962, %v959, 0
    %v967 = vsel %vm962, %v960, 0
    %969 = vmatpush.msra.mxu0 0.0
    %970 = vmatpush.msra.mxu0 0.0
    %971 = vmatpush.msra.mxu0 0.0
    %972 = vmatpush.msra.mxu0 0.0
    %973 = vmatpush.msra.mxu0 0.0
    %974 = vmatpush.msra.mxu0 0.0
    %975 = vmatpush.msra.mxu0 0.0
    %976 = vmatpush.msra.mxu0 0.0
    %977 = vmatpush.msra.mxu0 %v83
    %978 = vmatpush.msra.mxu0 %v82
    %979 = vmatpush.msra.mxu0 %v81
    %980 = vmatpush.msra.mxu0 %v80
    %981 = vmatpush.msra.mxu0 %v79
    %982 = vmatpush.msra.mxu0 %v78
    %983 = vmatpush.msra.mxu0 %v77
    %984 = vmatpush.msra.mxu0 %v76
    %985 = vmatmul.f32.gmra.mxu0 %v964
    %v986 = vpop.f32.mrf.mxu0
    %v987 = vadd.f32 %v961, %v986
    %988 = vmatmul.f32.gmra.mxu0 %v967
    %v989 = vpop.f32.mrf.mxu0
    %v990 = vadd.f32 %v961, %v989
    %991 = vdwg.mxu0
    %v992 = vadd.f32 %v877, %v987
    %v993 = vadd.f32 %v878, %v990
    %994 = vst.msk [vmem:[#allocation8] sm:$0xff] %vm92, %v992
    %995 = vst.msk [vmem:[#allocation8 + $0x8] sm:$0xff] %vm92, %v993
    // Predicated region
    $region26: #{encoder_block.1} parent=1 // pred_check
      _
    $region27: #{encoder_block.1} parent=1 // pred_check_branch
      %997 = sbr.rel (0) target = $region29
    $region28: #{encoder_block.1} parent=1 // pred_region
      %999 = vsyncadd [#allocation4], 0
      %s1000 = sshll.u32 [#allocation8], 4
      %s1001 = int_to_ptr.vmem [resolvable:$true] %s1000
      %s1002 = sshll.u32 %s3, 4
      %s1003 = int_to_ptr.hbm [resolvable:$true] %s1002
      %1008 = dma.vmem_to_hbm [thread:$0]  %s1001, 256, %s1003, [#allocation4], 128, 128, 8
    $region29: #{encoder_block.1} parent=1 // pred_fallthru
      _
    // Predicated region
    $region30: #{encoder_block.1} parent=1 // pred_check
      _
    $region31: #{encoder_block.1} parent=1 // pred_check_branch
      %1010 = sbr.rel (0) target = $region33
    $region32: #{encoder_block.1} parent=1 // pred_region
      %1012 = dma.done [#allocation4], 256
    $region33: #{encoder_block.1} parent=1 // pred_fallthru
      _
    %1013 = vsyncpa [#allocation3], 1
    %1014 = vsyncpa [#allocation6], 1
    %1015 = vsyncpa [#allocation4], 1

</llo_original>
